<compile_context>
chip_gen: v7x
topology: tpu7x:2x2x1
jax: 0.10.0
libtpu: 0.0.40
codegen_flags: <defaults>
</compile_context>

<pallas_src>
import jax
import jax.numpy as jnp
from jax.experimental import pallas as pl
from jax.experimental.pallas import tpu as pltpu

_LANE = 128          # vreg lane width
_MXU_ALIGN = 256     # v6e/v7x MXU is 2x256x256; 256-alignment is also fine on v5e


def _round_up(x, m):
    return (x + m - 1) // m * m


def _vmem_limit_bytes():
    """Generation-aware scoped-VMEM request (v5e/v6e: 128 MiB phys, v7x: 64 MiB)."""
    try:
        phys = pltpu.get_tpu_info().vmem_capacity_bytes
        return int(min(phys * 3 // 4, 96 * 1024 * 1024))
    except Exception:
        # Conservative fallback that is safe on every generation.
        return 32 * 1024 * 1024


# -----------------------------------------------------------------------------
# Kernels
# -----------------------------------------------------------------------------
def _linear_whole_kernel(x_ref, wt_ref, o_ref):
    # Whole operands in single VMEM blocks; wt is (K, O_pad), O_pad % 128 == 0,
    # so the output store is lane-dense.  x is cast to the weight's compute
    # dtype (bf16 by default) in-VMEM before hitting the MXU.
    x = x_ref[...].astype(wt_ref.dtype)
    o_ref[...] = jnp.dot(
        x, wt_ref[...], preferred_element_type=jnp.float32
    ).astype(o_ref.dtype)


def _linear_resident_w_kernel(x_ref, wt_ref, o_ref):
    # Weight block is full-extent with a constant index_map -> DMA'd once and
    # kept resident; the grid only streams M tiles.  No k axis, no accumulator.
    x = x_ref[...].astype(wt_ref.dtype)
    o_ref[...] = jnp.dot(
        x, wt_ref[...], preferred_element_type=jnp.float32
    ).astype(o_ref.dtype)


def _linear_tiled_kernel(x_ref, wt_ref, o_ref, acc_ref):
    # Standard M/N/K tiling with an f32 accumulator resident across the k axis.
    @pl.when(pl.program_id(2) == 0)
    def _():
        acc_ref[...] = jnp.zeros_like(acc_ref)

    x = x_ref[...].astype(wt_ref.dtype)
    acc_ref[...] += jnp.dot(x, wt_ref[...], preferred_element_type=jnp.float32)

    @pl.when(pl.program_id(2) == pl.num_programs(2) - 1)
    def _():
        o_ref[...] = acc_ref[...].astype(o_ref.dtype)


# -----------------------------------------------------------------------------
# Wrappers
# -----------------------------------------------------------------------------
def prepare_weight(weight, compute_dtype=jnp.bfloat16):
    """ONE-TIME weight prep (call at parameter-init time, not per forward).

    Takes the nn.Linear weight in PyTorch layout (output_size, input_size) and:
      * transposes it to (input_size, O_pad),
      * pads the output dim up to a multiple of 128 (lane-dense kernel stores),
      * casts it to `compute_dtype` (bf16 by default -> ~3-4x MXU throughput and
        half the weight DMA bytes; accumulation in the kernels stays f32).
    """
    out_size, in_size = weight.shape
    o_pad = _round_up(out_size, _LANE)
    wt = weight.T  # (K, O)
    if o_pad != out_size:
        wt = jnp.pad(wt, ((0, 0), (0, o_pad - out_size)))
    return wt.astype(compute_dtype)


def one_param_forward(x, wt_prepared, output_size, *, tm=512, tn=512, tk=512):
    """y = x @ W^T  (nn.Linear, bias=False), with W pre-processed by prepare_weight.

    x:           (batch, input_size) float32
    wt_prepared: (input_size, O_pad), O_pad a multiple of 128 (usually bf16)
    """
    batch, in_size = x.shape
    k_dim, o_pad = wt_prepared.shape
    if k_dim != in_size:
        raise ValueError("weight/input size mismatch")

    vmem_limit = _vmem_limit_bytes()
    itemsize = jnp.dtype(x.dtype).itemsize
    out_bytes = batch * o_pad * itemsize
    total_bytes = x.nbytes + wt_prepared.nbytes + out_bytes

    # ---- Path A: whole problem in one VMEM block (no grid, no per-step overhead).
    if total_bytes <= 16 * 1024 * 1024:
        y_pad = pl.pallas_call(
            _linear_whole_kernel,
            out_shape=jax.ShapeDtypeStruct((batch, o_pad), x.dtype),
            compiler_params=pltpu.CompilerParams(vmem_limit_bytes=vmem_limit),
        )(x, wt_prepared)
        return y_pad[:, :output_size]

    # ---- Path B: weight fully VMEM-resident, stream only M tiles.
    weight_budget = min(vmem_limit // 4, 24 * 1024 * 1024)
    if wt_prepared.nbytes <= weight_budget:
        x_row_b = in_size * itemsize
        o_row_b = o_pad * itemsize
        # Largest MXU-aligned M tile not exceeding tm / the batch.
        tm_eff = min(tm, max(_MXU_ALIGN, _round_up(batch, _MXU_ALIGN)))
        tm_eff = min(tm_eff, max(8, _round_up(batch, 8)))
        # v7x megacore: ensure the "parallel" M axis has >= 2 blocks when possible.
        if batch > _MXU_ALIGN and pl.cdiv(batch, tm_eff) < 2:
            tm_eff = max(_MXU_ALIGN, _round_up(pl.cdiv(batch, 2), _MXU_ALIGN))

        def _footprint(t):
            # 2x buffers for x & out blocks, weight counted double-buffered too.
            return 2 * wt_prepared.nbytes + 2 * t * (x_row_b + o_row_b)

        while tm_eff > _MXU_ALIGN and _footprint(tm_eff) > int(0.9 * vmem_limit):
            tm_eff -= _MXU_ALIGN

        if _footprint(tm_eff) <= int(0.9 * vmem_limit):
            grid = (pl.cdiv(batch, tm_eff),)  # partial last M block: masked writes
            y_pad = pl.pallas_call(
                _linear_resident_w_kernel,
                out_shape=jax.ShapeDtypeStruct((batch, o_pad), x.dtype),
                grid=grid,
                in_specs=[
                    pl.BlockSpec((tm_eff, in_size), lambda i: (i, 0)),
                    pl.BlockSpec((in_size, o_pad), lambda i: (0, 0)),  # resident
                ],
                out_specs=pl.BlockSpec((tm_eff, o_pad), lambda i: (i, 0)),
                compiler_params=pltpu.CompilerParams(
                    dimension_semantics=("parallel",),
                    vmem_limit_bytes=vmem_limit,
                ),
            )(x, wt_prepared)
            return y_pad[:, :output_size]

    # ---- Path C: big-weight fallback, full (i, j, k) tiling + f32 accumulator.
    tm_c = min(tm, max(_MXU_ALIGN, _round_up(batch, _MXU_ALIGN)))
    tm_c = min(tm_c, max(8, _round_up(batch, 8)))
    tn_c = min(tn, o_pad)                                   # o_pad % 128 == 0
    tk_c = min(tk, max(_MXU_ALIGN, _round_up(in_size, _MXU_ALIGN)))

    k_pad = _round_up(in_size, tk_c)
    x_c, wt_c = x, wt_prepared
    if k_pad != in_size:
        # A K remainder would corrupt the accumulation, so pad K here.
        # TODO(synk): pre-pad K in prepare_weight / pick tk dividing K to avoid
        # this per-call activation pad (rarely hit: only for >24 MiB weights).
        x_c = jnp.pad(x, ((0, 0), (0, k_pad - in_size)))
        wt_c = jnp.pad(wt_prepared, ((0, k_pad - in_size), (0, 0)))

    grid = (pl.cdiv(batch, tm_c), pl.cdiv(o_pad, tn_c), k_pad // tk_c)
    y_pad = pl.pallas_call(
        _linear_tiled_kernel,
        out_shape=jax.ShapeDtypeStruct((batch, o_pad), x.dtype),
        grid=grid,
        in_specs=[
            pl.BlockSpec((tm_c, tk_c), lambda i, j, kk: (i, kk)),
            pl.BlockSpec((tk_c, tn_c), lambda i, j, kk: (kk, j)),
        ],
        out_specs=pl.BlockSpec((tm_c, tn_c), lambda i, j, kk: (i, j)),
        scratch_shapes=[pltpu.VMEM((tm_c, tn_c), jnp.float32)],
        compiler_params=pltpu.CompilerParams(
            # reduction axis last & arbitrary; i/j parallel (v7x megacore).
            dimension_semantics=("parallel", "parallel", "arbitrary"),
            vmem_limit_bytes=vmem_limit,
        ),
    )(x_c, wt_c)
    return y_pad[:batch, :output_size]


if __name__ == "__main__":
    key = jax.random.PRNGKey(0)

    # ---- Test 1: the module's own tiny shape (Path A, single VMEM block).
    batch, input_size, output_size = 8, 32, 16
    k1, k2, k3, k4, k5, k6 = jax.random.split(key, 6)

    x1 = jax.random.normal(k1, (batch, input_size), dtype=jnp.float32)
    bound = 1.0 / (input_size ** 0.5)
    w1 = jax.random.uniform(
        k2, (output_size, input_size), dtype=jnp.float32, minval=-bound, maxval=bound
    )
    wt1 = prepare_weight(w1)              # one-time prep, outside the hot path
    y1 = one_param_forward(x1, wt1, output_size)
    jax.block_until_ready(y1)
    y1_ref = x1 @ w1.T
    assert y1.shape == (batch, output_size)
    assert jnp.allclose(y1, y1_ref, atol=2e-2, rtol=2e-2)

    # ---- Test 2: mid size (Path B, weight-resident M-streaming pipeline).
    M2, K2, O2 = 2048, 2048, 1024
    x2 = jax.random.normal(k3, (M2, K2), dtype=jnp.float32)
    w2 = jax.random.normal(k4, (O2, K2), dtype=jnp.float32) * 0.03
    y2 = one_param_forward(x2, prepare_weight(w2), O2)
    jax.block_until_ready(y2)
    y2_ref = jnp.dot(
        x2.astype(jnp.bfloat16), w2.T.astype(jnp.bfloat16),
        preferred_element_type=jnp.float32,
    )
    assert y2.shape == (M2, O2)
    assert jnp.allclose(y2, y2_ref, atol=1e-2, rtol=1e-2)

    # ---- Test 3: big weight (Path C, (i, j, k) tiling with f32 accumulator).
    M3, K3, O3 = 640, 4096, 3200
    x3 = jax.random.normal(k5, (M3, K3), dtype=jnp.float32)
    w3 = jax.random.normal(k6, (O3, K3), dtype=jnp.float32) * 0.02
    y3 = one_param_forward(x3, prepare_weight(w3), O3)
    jax.block_until_ready(y3)
    y3_ref = jnp.dot(
        x3.astype(jnp.bfloat16), w3.T.astype(jnp.bfloat16),
        preferred_element_type=jnp.float32,
    )
    assert y3.shape == (M3, O3)
    assert jnp.allclose(y3, y3_ref, atol=1e-2, rtol=1e-2)

    print("KERNEL_OK")
</pallas_src>

<mosaic_0001>
module attributes {stable_mosaic.version = 11 : i64} {
  func.func @_linear_whole_kernel(%arg0: memref<8x32xf32, #tpu.memory_space<vmem>>, %arg1: memref<32x128xbf16, #tpu.memory_space<vmem>>, %arg2: memref<8x128xf32, #tpu.memory_space<vmem>>) attributes {dimension_semantics = [], scalar_prefetch = 0 : i64, scratch_operands = 0 : i64, tpu.core_type = #tpu.core_type<tc>} {
    %c0 = arith.constant 0 : index
    %c0_0 = arith.constant 0 : index
    %0 = vector.load %arg0[%c0, %c0_0] : memref<8x32xf32, #tpu.memory_space<vmem>>, vector<8x32xf32>
    %1 = arith.truncf %0 : vector<8x32xf32> to vector<8x32xbf16>
    %c0_1 = arith.constant 0 : index
    %c0_2 = arith.constant 0 : index
    %2 = vector.load %arg1[%c0_1, %c0_2] : memref<32x128xbf16, #tpu.memory_space<vmem>>, vector<32x128xbf16>
    %cst = arith.constant dense<0.000000e+00> : vector<8x128xf32>
    %3 = tpu.matmul %1, %2, %cst {dimension_numbers = #tpu.dot_dimension_numbers<[1], [0], [0], [1], [0, 0, 1, 1], [], []>} : vector<8x32xbf16>, vector<32x128xbf16>, vector<8x128xf32> -> vector<8x128xf32>
    %c0_3 = arith.constant 0 : index
    %c0_4 = arith.constant 0 : index
    %4 = vector.load %arg2[%c0_3, %c0_4] : memref<8x128xf32, #tpu.memory_space<vmem>>, vector<8x128xf32>
    tpu.vector_store %arg2[%c0_3, %c0_4], %3 {strides = array<i32>} : memref<8x128xf32, #tpu.memory_space<vmem>>, vector<8x128xf32>,
    return
  }
}

</mosaic_0001>

<llo_original>
// kernel: tpu_custom_call.1
$region0: #{tpu_custom_call.1}
  #allocation0 [shape = 'u32[]', space=smem, size = 0x4, offset = 0x4, fixed_abs, tag = 'smem constant byte address 0x4 - core index']
  #allocation1 [shape = 'u32[144,128]{1,0:T(1,128)}', space=vmem, size = 0x12000, scoped, tag = 'internal scratch']
  %s0 = inlined_call_operand.hbm [shape: f32[8,32], index: 0, kind: input, shape index: {}]
  %s1 = inlined_call_operand.hbm [shape: bf16[32,128], index: 1, kind: input, shape index: {}]
  %s2 = inlined_call_operand.hbm [shape: f32[8,128], index: 2, kind: output, shape index: {}]
  %s3 = sld [smem:[#allocation0]]
  $region26: #{tpu_custom_call.1} parent=0
    _
  %s5 = ssub.s32 1, %s3
  %s6 = scalar_select 0, %s5, %s3
  $region1: #{tpu_custom_call.1} parent=0
    #allocation2 [shape = 'u8[4096]{0}', space=vmem, size = 0x1000, scoped, tag = 'input window, operand 0, single buffered']
    #allocation3 [shape = 's32[1]{0}', space=sflag, size = 0x4, scoped, tag = 'scoped memory for tpu_custom_call.1']
    #allocation4 [shape = 's32[1]{0}', space=sflag, size = 0x4, scoped, tag = 'scoped memory for tpu_custom_call.1']
    #allocation5 [shape = 'u8[8192]{0}', space=vmem, size = 0x2000, scoped, tag = 'input window, operand 1, single buffered']
    #allocation6 [shape = 's32[1]{0}', space=sflag, size = 0x4, scoped, tag = 'scoped memory for tpu_custom_call.1']
    #allocation7 [shape = 'u8[4096]{0}', space=vmem, size = 0x1000, scoped, tag = 'output window, operand 0, single buffered']
    %7 = vsyncpa [#allocation3], 0
    %8 = vsyncpa [#allocation6], 0
    %9 = vsyncpa [#allocation4], 0
    // Predicated region
    $region2: #{tpu_custom_call.1} parent=1 // pred_check
      _
    $region3: #{tpu_custom_call.1} parent=1 // pred_check_branch
      %11 = sbr.rel (0) target = $region5
    $region4: #{tpu_custom_call.1} parent=1 // pred_region
      %s13 = ssub.s32 128, 128
      %14 = vsyncadd [#allocation3], %s13
      %s16 = sshll.u32 [#allocation2], 4
      %s17 = int_to_ptr.vmem [resolvable:$true] %s16
      %19 = dma.hbm_to_vmem [thread:$0]  %s0, 128, %s17, [#allocation3]
    $region5: #{tpu_custom_call.1} parent=1 // pred_fallthru
      _
    // Predicated region
    $region6: #{tpu_custom_call.1} parent=1 // pred_check
      _
    $region7: #{tpu_custom_call.1} parent=1 // pred_check_branch
      %21 = sbr.rel (0) target = $region9
    $region8: #{tpu_custom_call.1} parent=1 // pred_region
      %s23 = ssub.s32 256, 256
      %24 = vsyncadd [#allocation6], %s23
      %s25 = sshll.u32 [#allocation5], 4
      %s26 = int_to_ptr.vmem [resolvable:$true] %s25
      %31 = dma.hbm_to_vmem [thread:$0]  %s1, 256, %s26, [#allocation6], 64, 64, 4
    $region9: #{tpu_custom_call.1} parent=1 // pred_fallthru
      _
    // Predicated region
    $region10: #{tpu_custom_call.1} parent=1 // pred_check
      _
    $region11: #{tpu_custom_call.1} parent=1 // pred_check_branch
      %33 = sbr.rel (0) target = $region13
    $region12: #{tpu_custom_call.1} parent=1 // pred_region
      %34 = dma.done [#allocation3], 128
    $region13: #{tpu_custom_call.1} parent=1 // pred_fallthru
      _
    // Predicated region
    $region14: #{tpu_custom_call.1} parent=1 // pred_check
      _
    $region15: #{tpu_custom_call.1} parent=1 // pred_check_branch
      %36 = sbr.rel (0) target = $region17
    $region16: #{tpu_custom_call.1} parent=1 // pred_region
      %37 = dma.done [#allocation6], 256
    $region17: #{tpu_custom_call.1} parent=1 // pred_fallthru
      _
    %v39 = vld [vmem:[#allocation2] sm:$0xff]
    %v40 = vpack.c.bf16 %v39, %v39
    %v41 = vld [vmem:[#allocation5] sm:$0xf]
    %v42 = vld [vmem:[#allocation5 + $0x4] sm:$0xf]
    %v43 = vld [vmem:[#allocation5 + $0x8] sm:$0xf]
    %v44 = vld [vmem:[#allocation5 + $0xc] sm:$0xf]
    %v49 = vunpack.c.l.b16 %v41
    %v50 = vunpack.c.l.b16 %v42
    %v51 = vunpack.c.l.b16 %v43
    %v52 = vunpack.c.l.b16 %v44
    %v53 = vpack.c.b16 %v50, %v49
    %v54 = vpack.c.b16 %v52, %v51
    %vm57 = vcmask 261120
    %v59 = vsel %vm57, %v40, 0
    %61 = vmatprep.subr.bf16.mxu0 0
    %62 = vmatpush1.bf16.msra.mxu0 %v53
    %63 = vmatprep.subr.bf16.mxu0 0
    %64 = vmatpush1.bf16.msra.mxu0 %v54
    %65 = vmatprep.subr.bf16.mxu0 0
    %66 = vmatpush1.bf16.msra.mxu0 0
    %67 = vmatprep.subr.bf16.mxu0 0
    %68 = vmatpush1.bf16.msra.mxu0 0
    %69 = vmatprep.subr.bf16.mxu0 0
    %70 = vmatpush1.bf16.msra.mxu0 0
    %71 = vmatprep.subr.bf16.mxu0 0
    %72 = vmatpush1.bf16.msra.mxu0 0
    %73 = vmatprep.subr.bf16.mxu0 0
    %74 = vmatpush1.bf16.msra.mxu0 0
    %75 = vmatprep.subr.bf16.mxu0 0
    %76 = vmatpush1.bf16.msra.mxu0 0
    %77 = vmatprep.subr.bf16.mxu0 0
    %78 = vmatpush1.bf16.msra.mxu0 0
    %79 = vmatprep.subr.bf16.mxu0 0
    %80 = vmatpush1.bf16.msra.mxu0 0
    %81 = vmatprep.subr.bf16.mxu0 0
    %82 = vmatpush1.bf16.msra.mxu0 0
    %83 = vmatprep.subr.bf16.mxu0 0
    %84 = vmatpush1.bf16.msra.mxu0 0
    %85 = vmatprep.subr.bf16.mxu0 0
    %86 = vmatpush1.bf16.msra.mxu0 0
    %87 = vmatprep.subr.bf16.mxu0 0
    %88 = vmatpush1.bf16.msra.mxu0 0
    %89 = vmatprep.subr.bf16.mxu0 0
    %90 = vmatpush1.bf16.msra.mxu0 0
    %91 = vmatprep.subr.bf16.mxu0 0
    %92 = vmatpush1.bf16.msra.mxu0 0
    %93 = vmatprep.mubr.bf16.mxu0 0
    %94 = vmatmul.mubr.bf16.gmra.mrb[0].mxu0 %v59
    %v95 = vpop.f32.mrb[0].mxu0
    %v96 = vadd.f32 0.0, %v95
    %v97 = vpop.f32.mrb[0].mxu0
    %v98 = vpop.f32.mrb[0].mxu0
    %v99 = vpop.f32.mrb[0].mxu0
    %100 = vdwg.mxu0
    %101 = vst [vmem:[#allocation7] sm:$0xff] %v96
    // Predicated region
    $region18: #{tpu_custom_call.1} parent=1 // pred_check
      _
    $region19: #{tpu_custom_call.1} parent=1 // pred_check_branch
      %103 = sbr.rel (0) target = $region21
    $region20: #{tpu_custom_call.1} parent=1 // pred_region
      %s105 = ssub.s32 128, 128
      %106 = vsyncadd [#allocation4], %s105
      %s108 = sshll.u32 [#allocation7], 4
      %s109 = int_to_ptr.vmem [resolvable:$true] %s108
      %111 = dma.vmem_to_hbm [thread:$0]  %s109, 128, %s2, [#allocation4]
    $region21: #{tpu_custom_call.1} parent=1 // pred_fallthru
      _
    // Predicated region
    $region22: #{tpu_custom_call.1} parent=1 // pred_check
      _
    $region23: #{tpu_custom_call.1} parent=1 // pred_check_branch
      %113 = sbr.rel (0) target = $region25
    $region24: #{tpu_custom_call.1} parent=1 // pred_region
      %114 = dma.done [#allocation4], 128
    $region25: #{tpu_custom_call.1} parent=1 // pred_fallthru
      _
    %115 = vsyncpa [#allocation3], 1
    %116 = vsyncpa [#allocation6], 1
    %117 = vsyncpa [#allocation4], 1

</llo_original>
